<compile_context>
chip_gen: v6e
topology: v6e:2x2x1
jax: 0.10.0
libtpu: 0.0.40
codegen_flags: <defaults>
</compile_context>

<pallas_src>
from functools import partial

import jax
import jax.numpy as jnp
from jax.experimental import pallas as pl
from jax.experimental.pallas import tpu as pltpu


def _round_up(x, m):
    return (x + m - 1) // m * m


def classification_head_kernel(x_ref, w1_ref, b1_ref, w2_ref, b2_ref, o_ref):
    # x_ref:  (TB, F)  float32   (bf16 cast happens here, not in the wrapper)
    # w1_ref: (F, H)   bfloat16
    # b1_ref: (1, H)   float32
    # w2_ref: (H, C)   bfloat16
    # b2_ref: (1, C)   float32
    # o_ref:  (TB, C)  float32   (narrow, unpadded output block)
    x = x_ref[...].astype(jnp.bfloat16)
    h = jnp.dot(x, w1_ref[...], preferred_element_type=jnp.float32)
    h = jnp.maximum(h + b1_ref[...], 0.0)

    logits = jnp.dot(h.astype(jnp.bfloat16), w2_ref[...],
                     preferred_element_type=jnp.float32) + b2_ref[...]

    # numerically stable softmax over the class axis (all post-matmul math in f32)
    m = jnp.max(logits, axis=-1, keepdims=True)
    e = jnp.exp(logits - m)
    denom = jnp.sum(e, axis=-1, keepdims=True)
    o_ref[...] = e * pl.reciprocal(denom, approx=True)


def prepare_head_params(w1, b1, w2, b2):
    """One-time weight prep (bf16 MXU weights, 2-D f32 biases). Call once, reuse."""
    return (w1.astype(jnp.bfloat16),
            b1.reshape(1, -1).astype(jnp.float32),
            w2.astype(jnp.bfloat16),
            b2.reshape(1, -1).astype(jnp.float32))


@partial(jax.jit, static_argnames=("block_batch",))
def classification_head(x, w1_bf, b1_2d, w2_bf, b2_2d, *, block_batch=2048):
    """x: (B, F) f32; w1_bf: (F, H) bf16; b1_2d: (1, H); w2_bf: (H, C) bf16;
    b2_2d: (1, C).  Returns softmax probabilities, shape (B, C) f32."""
    B, F = x.shape
    H = w1_bf.shape[1]
    C = w2_bf.shape[1]
    assert w1_bf.shape[0] == F and w2_bf.shape[0] == H
    assert b1_2d.shape == (1, H) and b2_2d.shape == (1, C)

    # Batch tile: big enough to amortize per-grid-step overhead, but at least two
    # grid steps when B allows so v7x can shard the "parallel" axis over both TCs.
    # (block_batch=2048 is a safe default across v5e/v6e/v7x; bump to 4096+ on
    # v6e/v7x if profiling shows the grid-step overhead is still exposed.)
    mult = 16 if B >= 16 else 8
    tb = min(block_batch, max(mult, _round_up(pl.cdiv(B, 2), mult)))
    grid = (pl.cdiv(B, tb),)

    # VMEM budget: double-buffered x/out tiles + resident weights + straight-line
    # intermediates (h f32, h bf16, logits/e vregs).  Clamp to 64 MiB (v7x physical).
    per_row = 2 * F * 4 + 2 * C * 4 + H * 4 + H * 2 + 2 * max(C, 128) * 4
    vmem_bytes = tb * per_row + (F * H + H * C) * 2 + (H + C) * 4 + (2 << 20)
    vmem_limit = int(min(max(32 << 20, 2 * vmem_bytes), 64 << 20))

    return pl.pallas_call(
        classification_head_kernel,
        out_shape=jax.ShapeDtypeStruct((B, C), jnp.float32),
        grid=grid,
        in_specs=[
            pl.BlockSpec((tb, F), lambda i: (i, 0)),   # x: streams per batch tile
            pl.BlockSpec((F, H), lambda i: (0, 0)),    # w1: grid-invariant, VMEM-resident
            pl.BlockSpec((1, H), lambda i: (0, 0)),    # b1
            pl.BlockSpec((H, C), lambda i: (0, 0)),    # w2
            pl.BlockSpec((1, C), lambda i: (0, 0)),    # b2
        ],
        out_specs=pl.BlockSpec((tb, C), lambda i: (i, 0)),
        compiler_params=pltpu.CompilerParams(
            dimension_semantics=("parallel",),
            vmem_limit_bytes=vmem_limit,
        ),
    )(x, w1_bf, b1_2d, w2_bf, b2_2d)


def reference(x, w1, b1, w2, b2):
    """Pure-JAX reference with the same bf16 MXU-input rounding as the kernel."""
    xb = x.astype(jnp.bfloat16).astype(jnp.float32)
    w1b = w1.astype(jnp.bfloat16).astype(jnp.float32)
    w2b = w2.astype(jnp.bfloat16).astype(jnp.float32)
    h = jnp.maximum(xb @ w1b + b1, 0.0)
    hb = h.astype(jnp.bfloat16).astype(jnp.float32)
    logits = hb @ w2b + b2
    return jax.nn.softmax(logits, axis=-1)


def init_params(key, embedding_dim, n_classes, hidden=256):
    """Deterministic init matching nn.Linear shapes (uniform +/- 1/sqrt(fan_in))."""
    in1 = 2 * embedding_dim
    k1, k2, k3, k4 = jax.random.split(key, 4)
    bound1 = 1.0 / (in1 ** 0.5)
    bound2 = 1.0 / (hidden ** 0.5)
    # stored pre-transposed: (in, out)
    w1 = jax.random.uniform(k1, (in1, hidden), jnp.float32, -bound1, bound1)
    b1 = jax.random.uniform(k2, (hidden,), jnp.float32, -bound1, bound1)
    w2 = jax.random.uniform(k3, (hidden, n_classes), jnp.float32, -bound2, bound2)
    b2 = jax.random.uniform(k4, (n_classes,), jnp.float32, -bound2, bound2)
    return w1, b1, w2, b2


if __name__ == "__main__":
    embedding_dim = 16   # head input is 2 * embedding_dim = 32 features
    n_classes = 8
    batch = 8

    key = jax.random.PRNGKey(0)
    kx, kp = jax.random.split(key)
    x = jax.random.normal(kx, (batch, 2 * embedding_dim), dtype=jnp.float32)
    w1, b1, w2, b2 = init_params(kp, embedding_dim, n_classes)

    params = prepare_head_params(w1, b1, w2, b2)   # one-time weight prep (cached)
    out = classification_head(x, *params)
    out = jax.block_until_ready(out)

    assert out.shape == (batch, n_classes)
    # softmax rows sum to 1 (approx reciprocal tolerance)
    row_sums = jnp.sum(out, axis=1)
    assert bool(jnp.all(jnp.abs(row_sums - 1.0) < 5e-3)), row_sums
    # match pure-JAX reference
    ref = reference(x, w1, b1, w2, b2)
    assert bool(jnp.all(jnp.abs(out - ref) < 5e-3)), jnp.max(jnp.abs(out - ref))

    print("KERNEL_OK")
</pallas_src>

<mosaic_0001>
module attributes {stable_mosaic.version = 11 : i64} {
  func.func @classification_head_kernel(%arg0: i32, %arg1: memref<8x32xf32, #tpu.memory_space<vmem>>, %arg2: memref<32x256xbf16, #tpu.memory_space<vmem>>, %arg3: memref<1x256xf32, #tpu.memory_space<vmem>>, %arg4: memref<256x8xbf16, #tpu.memory_space<vmem>>, %arg5: memref<1x8xf32, #tpu.memory_space<vmem>>, %arg6: memref<8x8xf32, #tpu.memory_space<vmem>>) attributes {dimension_semantics = [#tpu.dimension_semantics<parallel>], iteration_bounds = array<i64: 1>, scalar_prefetch = 0 : i64, scratch_operands = 0 : i64, tpu.core_type = #tpu.core_type<tc>, window_params = [{transform_indices = @transform_0, window_bounds = array<i64: 8, 32>}, {pipeline_mode = #tpu.pipeline_mode<synchronous>, transform_indices = @transform_1, window_bounds = array<i64: 32, 256>}, {pipeline_mode = #tpu.pipeline_mode<synchronous>, transform_indices = @transform_2, window_bounds = array<i64: 1, 256>}, {pipeline_mode = #tpu.pipeline_mode<synchronous>, transform_indices = @transform_3, window_bounds = array<i64: 256, 8>}, {pipeline_mode = #tpu.pipeline_mode<synchronous>, transform_indices = @transform_4, window_bounds = array<i64: 1, 8>}, {transform_indices = @transform_5, window_bounds = array<i64: 8, 8>}]} {
    %c0 = arith.constant 0 : index
    %c0_0 = arith.constant 0 : index
    %0 = vector.load %arg1[%c0, %c0_0] : memref<8x32xf32, #tpu.memory_space<vmem>>, vector<8x32xf32>
    %1 = arith.truncf %0 : vector<8x32xf32> to vector<8x32xbf16>
    %c0_1 = arith.constant 0 : index
    %c0_2 = arith.constant 0 : index
    %2 = vector.load %arg2[%c0_1, %c0_2] : memref<32x256xbf16, #tpu.memory_space<vmem>>, vector<32x256xbf16>
    %cst = arith.constant dense<0.000000e+00> : vector<8x256xf32>
    %3 = tpu.matmul %1, %2, %cst {dimension_numbers = #tpu.dot_dimension_numbers<[1], [0], [0], [1], [0, 0, 1, 1], [], []>} : vector<8x32xbf16>, vector<32x256xbf16>, vector<8x256xf32> -> vector<8x256xf32>
    %c0_3 = arith.constant 0 : index
    %c0_4 = arith.constant 0 : index
    %4 = vector.load %arg3[%c0_3, %c0_4] : memref<1x256xf32, #tpu.memory_space<vmem>>, vector<1x256xf32>
    %5 = vector.broadcast %4 : vector<1x256xf32> to vector<8x256xf32>
    %6 = arith.addf %3, %5 : vector<8x256xf32>
    %cst_5 = arith.constant 0.000000e+00 : f32
    %7 = vector.broadcast %cst_5 : f32 to vector<8x256xf32>
    %8 = arith.maximumf %6, %7 : vector<8x256xf32>
    %9 = arith.truncf %8 : vector<8x256xf32> to vector<8x256xbf16>
    %c0_6 = arith.constant 0 : index
    %c0_7 = arith.constant 0 : index
    %10 = vector.load %arg4[%c0_6, %c0_7] : memref<256x8xbf16, #tpu.memory_space<vmem>>, vector<256x8xbf16>
    %cst_8 = arith.constant dense<0.000000e+00> : vector<8x8xf32>
    %11 = tpu.matmul %9, %10, %cst_8 {dimension_numbers = #tpu.dot_dimension_numbers<[1], [0], [0], [1], [0, 0, 1, 1], [], []>} : vector<8x256xbf16>, vector<256x8xbf16>, vector<8x8xf32> -> vector<8x8xf32>
    %c0_9 = arith.constant 0 : index
    %c0_10 = arith.constant 0 : index
    %12 = vector.load %arg5[%c0_9, %c0_10] : memref<1x8xf32, #tpu.memory_space<vmem>>, vector<1x8xf32>
    %13 = vector.broadcast %12 : vector<1x8xf32> to vector<8x8xf32>
    %14 = arith.addf %11, %13 : vector<8x8xf32>
    %cst_11 = arith.constant dense<0xFF800000> : vector<8xf32>
    %15 = vector.multi_reduction <maximumf>, %14, %cst_11 [1] : vector<8x8xf32> to vector<8xf32>
    %16 = vector.shape_cast %15 : vector<8xf32> to vector<8x1xf32>
    %17 = vector.broadcast %16 : vector<8x1xf32> to vector<8x8xf32>
    %18 = arith.subf %14, %17 : vector<8x8xf32>
    %19 = math.exp %18 : vector<8x8xf32>
    %cst_12 = arith.constant dense<0.000000e+00> : vector<8xf32>
    %20 = vector.multi_reduction <add>, %19, %cst_12 [1] : vector<8x8xf32> to vector<8xf32>
    %21 = vector.shape_cast %20 : vector<8xf32> to vector<8x1xf32>
    %22 = tpu.reciprocal %21 {approx = true} : vector<8x1xf32> -> vector<8x1xf32>
    %23 = vector.broadcast %22 : vector<8x1xf32> to vector<8x8xf32>
    %24 = arith.mulf %19, %23 : vector<8x8xf32>
    %c0_13 = arith.constant 0 : index
    %c0_14 = arith.constant 0 : index
    %25 = vector.load %arg6[%c0_13, %c0_14] : memref<8x8xf32, #tpu.memory_space<vmem>>, vector<8x8xf32>
    tpu.vector_store %arg6[%c0_13, %c0_14], %24 {strides = array<i32>} : memref<8x8xf32, #tpu.memory_space<vmem>>, vector<8x8xf32>,
    return
  }
  func.func @transform_0(%arg0: i32) -> (i32, i32) {
    %c0_i32 = arith.constant 0 : i32
    %c0_i32_0 = arith.constant 0 : i32
    return %arg0, %c0_i32 : i32, i32
  }
  func.func @transform_1(%arg0: i32) -> (i32, i32) {
    %c0_i32 = arith.constant 0 : i32
    %c0_i32_0 = arith.constant 0 : i32
    %c0_i32_1 = arith.constant 0 : i32
    return %c0_i32, %c0_i32_0 : i32, i32
  }
  func.func @transform_2(%arg0: i32) -> (i32, i32) {
    %c0_i32 = arith.constant 0 : i32
    %c0_i32_0 = arith.constant 0 : i32
    %c0_i32_1 = arith.constant 0 : i32
    return %c0_i32, %c0_i32_0 : i32, i32
  }
  func.func @transform_3(%arg0: i32) -> (i32, i32) {
    %c0_i32 = arith.constant 0 : i32
    %c0_i32_0 = arith.constant 0 : i32
    %c0_i32_1 = arith.constant 0 : i32
    return %c0_i32, %c0_i32_0 : i32, i32
  }
  func.func @transform_4(%arg0: i32) -> (i32, i32) {
    %c0_i32 = arith.constant 0 : i32
    %c0_i32_0 = arith.constant 0 : i32
    %c0_i32_1 = arith.constant 0 : i32
    return %c0_i32, %c0_i32_0 : i32, i32
  }
  func.func @transform_5(%arg0: i32) -> (i32, i32) {
    %c0_i32 = arith.constant 0 : i32
    %c0_i32_0 = arith.constant 0 : i32
    return %arg0, %c0_i32 : i32, i32
  }
}

</mosaic_0001>

<llo_original>
// kernel: classification_head.1
$region0: #{classification_head.1}
  #allocation0 [shape = 'u32[]', space=smem, size = 0x4, offset = 0x4, fixed_abs, tag = 'smem constant byte address 0x4 - core index']
  #allocation1 [shape = 'u32[144,128]{1,0:T(1,128)}', space=vmem, size = 0x12000, scoped, tag = 'internal scratch']
  %s0 = inlined_call_operand.vmem [shape: f32[8,32], index: 0, kind: input, shape index: {}]
  %s1 = inlined_call_operand.vmem [shape: bf16[32,256], index: 1, kind: input, shape index: {}]
  %s2 = inlined_call_operand.vmem [shape: f32[1,256], index: 2, kind: input, shape index: {}]
  %s3 = inlined_call_operand.vmem [shape: bf16[256,8], index: 3, kind: input, shape index: {}]
  %s4 = inlined_call_operand.vmem [shape: f32[1,8], index: 4, kind: input, shape index: {}]
  %s5 = inlined_call_operand.hbm [shape: f32[8,8], index: 5, kind: output, shape index: {}]
  %s6 = sld [smem:[#allocation0]]
  $region30: #{classification_head.1} parent=0
    _
  %s8 = ssub.s32 1, %s6
  %s9 = scalar_select 0, %s8, %s6
  $region1: #{classification_head.1} parent=0
    #allocation2 [shape = 'u8[4096]{0}', space=vmem, size = 0x1000, scoped, tag = 'output window, operand 0, single buffered']
    #allocation3 [shape = 's32[1]{0}', space=sflag, size = 0x4, scoped, tag = 'scoped memory for classification_head.1']
    %10 = vsyncpa [#allocation3], 0
    // Predicated region
    $region2: #{classification_head.1} parent=1 // pred_check
      _
    $region3: #{classification_head.1} parent=1 // pred_check_branch
      %12 = sbr.rel (0) target = $region5
    $region4: #{classification_head.1} parent=1 // pred_region
      _
    $region5: #{classification_head.1} parent=1 // pred_fallthru
      _
    // Predicated region
    $region6: #{classification_head.1} parent=1 // pred_check
      _
    $region7: #{classification_head.1} parent=1 // pred_check_branch
      %14 = sbr.rel (0) target = $region9
    $region8: #{classification_head.1} parent=1 // pred_region
      _
    $region9: #{classification_head.1} parent=1 // pred_fallthru
      _
    // Predicated region
    $region10: #{classification_head.1} parent=1 // pred_check
      _
    $region11: #{classification_head.1} parent=1 // pred_check_branch
      %16 = sbr.rel (0) target = $region13
    $region12: #{classification_head.1} parent=1 // pred_region
      _
    $region13: #{classification_head.1} parent=1 // pred_fallthru
      _
    // Predicated region
    $region14: #{classification_head.1} parent=1 // pred_check
      _
    $region15: #{classification_head.1} parent=1 // pred_check_branch
      %18 = sbr.rel (0) target = $region17
    $region16: #{classification_head.1} parent=1 // pred_region
      _
    $region17: #{classification_head.1} parent=1 // pred_fallthru
      _
    // Predicated region
    $region18: #{classification_head.1} parent=1 // pred_check
      _
    $region19: #{classification_head.1} parent=1 // pred_check_branch
      %20 = sbr.rel (0) target = $region21
    $region20: #{classification_head.1} parent=1 // pred_region
      _
    $region21: #{classification_head.1} parent=1 // pred_fallthru
      _
    %v22 = vld [vmem:[%s0] sm:$0xff]
    %v23 = vpack.c.bf16 %v22, %v22
    %v24 = vld [vmem:[%s1] sm:$0xff]
    %v25 = vld [vmem:[%s1 + $0x8] sm:$0xff]
    %v26 = vld [vmem:[%s1 + $0x10] sm:$0xff]
    %v27 = vld [vmem:[%s1 + $0x18] sm:$0xff]
    %v28 = vld [vmem:[%s2] sm:$0x3]
    %v30 = vlaneseq
    %v31 = vshrl.u32 %v30, 7
    %v32 = vsub.s32 0, %v31
    %v33 = vrot.slane %v28, %v32
    %v34 = vlaneseq
    %v35 = vshrl.u32 %v34, 7
    %v36 = vsub.s32 1, %v35
    %v37 = vrot.slane %v28, %v36
    %v44 = vunpack.c.l.b16 %v24
    %v45 = vunpack.c.h.b16 %v24
    %v46 = vunpack.c.l.b16 %v25
    %v47 = vunpack.c.h.b16 %v25
    %v48 = vunpack.c.l.b16 %v26
    %v49 = vunpack.c.h.b16 %v26
    %v50 = vunpack.c.l.b16 %v27
    %v51 = vunpack.c.h.b16 %v27
    %v52 = vpack.c.b16 %v46, %v44
    %v53 = vpack.c.b16 %v47, %v45
    %v54 = vpack.c.b16 %v50, %v48
    %v55 = vpack.c.b16 %v51, %v49
    %vm60 = vcmask 261120
    %v62 = vsel %vm60, %v23, 0
    %64 = vmatprep.subr.bf16.mxu0 0
    %65 = vmatpush1.bf16.msra.mxu0 0
    %66 = vmatprep.subr.bf16.mxu0 0
    %67 = vmatpush1.bf16.msra.mxu0 0
    %68 = vmatprep.subr.bf16.mxu0 0
    %69 = vmatpush1.bf16.msra.mxu0 0
    %70 = vmatprep.subr.bf16.mxu0 0
    %71 = vmatpush1.bf16.msra.mxu0 0
    %72 = vmatprep.subr.bf16.mxu0 0
    %73 = vmatpush1.bf16.msra.mxu0 0
    %74 = vmatprep.subr.bf16.mxu0 0
    %75 = vmatpush1.bf16.msra.mxu0 0
    %76 = vmatprep.subr.bf16.mxu0 %v55
    %77 = vmatpush1.bf16.msra.mxu0 %v54
    %78 = vmatprep.subr.bf16.mxu0 %v53
    %79 = vmatpush1.bf16.msra.mxu0 %v52
    %80 = vmatprep.subr.bf16.mxu0 0
    %81 = vmatpush2.bf16.msra.mxu0 0
    %82 = vmatprep.subr.bf16.mxu0 0
    %83 = vmatpush2.bf16.msra.mxu0 0
    %84 = vmatprep.subr.bf16.mxu0 0
    %85 = vmatpush2.bf16.msra.mxu0 0
    %86 = vmatprep.subr.bf16.mxu0 0
    %87 = vmatpush2.bf16.msra.mxu0 0
    %88 = vmatprep.subr.bf16.mxu0 0
    %89 = vmatpush2.bf16.msra.mxu0 0
    %90 = vmatprep.subr.bf16.mxu0 0
    %91 = vmatpush2.bf16.msra.mxu0 0
    %92 = vmatprep.subr.bf16.mxu0 0
    %93 = vmatpush2.bf16.msra.mxu0 0
    %94 = vmatprep.subr.bf16.mxu0 0
    %95 = vmatpush2.bf16.msra.mxu0 0
    %96 = vmatprep.mubr.bf16.mxu0 0
    %97 = vmatmul.mubr.bf16.gmra.mxu0 %v62
    %v98 = vpop.f32.mrf.mxu0
    %v99 = vadd.f32 %v33, %v98
    %v100 = vpop.f32.mrf.mxu0
    %v101 = vadd.f32 %v37, %v100
    %v102 = vpop.f32.mrf.mxu0
    %v103 = vpop.f32.mrf.mxu0
    %104 = vdwg.mxu0
    %v105 = vmax.f32 %v99, 0.0
    %v106 = vmax.f32 %v101, 0.0
    %v107 = vpack.c.bf16 %v105, %v105
    %v108 = vpack.c.bf16 %v106, %v106
    %v109 = vld [vmem:[%s3] sm:$0xf]
    %v110 = vld [vmem:[%s3 + $0x4] sm:$0xf]
    %v111 = vld [vmem:[%s3 + $0x8] sm:$0xf]
    %v112 = vld [vmem:[%s3 + $0xc] sm:$0xf]
    %v113 = vld [vmem:[%s3 + $0x10] sm:$0xf]
    %v114 = vld [vmem:[%s3 + $0x14] sm:$0xf]
    %v115 = vld [vmem:[%s3 + $0x18] sm:$0xf]
    %v116 = vld [vmem:[%s3 + $0x1c] sm:$0xf]
    %v117 = vld [vmem:[%s3 + $0x20] sm:$0xf]
    %v118 = vld [vmem:[%s3 + $0x24] sm:$0xf]
    %v119 = vld [vmem:[%s3 + $0x28] sm:$0xf]
    %v120 = vld [vmem:[%s3 + $0x2c] sm:$0xf]
    %v121 = vld [vmem:[%s3 + $0x30] sm:$0xf]
    %v122 = vld [vmem:[%s3 + $0x34] sm:$0xf]
    %v123 = vld [vmem:[%s3 + $0x38] sm:$0xf]
    %v124 = vld [vmem:[%s3 + $0x3c] sm:$0xf]
    %v125 = vld [vmem:[%s3 + $0x40] sm:$0xf]
    %v126 = vld [vmem:[%s3 + $0x44] sm:$0xf]
    %v127 = vld [vmem:[%s3 + $0x48] sm:$0xf]
    %v128 = vld [vmem:[%s3 + $0x4c] sm:$0xf]
    %v129 = vld [vmem:[%s3 + $0x50] sm:$0xf]
    %v130 = vld [vmem:[%s3 + $0x54] sm:$0xf]
    %v131 = vld [vmem:[%s3 + $0x58] sm:$0xf]
    %v132 = vld [vmem:[%s3 + $0x5c] sm:$0xf]
    %v133 = vld [vmem:[%s3 + $0x60] sm:$0xf]
    %v134 = vld [vmem:[%s3 + $0x64] sm:$0xf]
    %v135 = vld [vmem:[%s3 + $0x68] sm:$0xf]
    %v136 = vld [vmem:[%s3 + $0x6c] sm:$0xf]
    %v137 = vld [vmem:[%s3 + $0x70] sm:$0xf]
    %v138 = vld [vmem:[%s3 + $0x74] sm:$0xf]
    %v139 = vld [vmem:[%s3 + $0x78] sm:$0xf]
    %v140 = vld [vmem:[%s3 + $0x7c] sm:$0xf]
    %v141 = vld [vmem:[%s4] sm:$0x1]
    %v143 = vlaneseq
    %v144 = vshrl.u32 %v143, 7
    %v145 = vsub.s32 0, %v144
    %v146 = vrot.slane %v141, %v145
    %v180 = vunpack.c.l.b16 %v109
    %v181 = vunpack.c.l.b16 %v110
    %v182 = vunpack.c.l.b16 %v111
    %v183 = vunpack.c.l.b16 %v112
    %v184 = vunpack.c.l.b16 %v113
    %v185 = vunpack.c.l.b16 %v114
    %v186 = vunpack.c.l.b16 %v115
    %v187 = vunpack.c.l.b16 %v116
    %v188 = vunpack.c.l.b16 %v117
    %v189 = vunpack.c.l.b16 %v118
    %v190 = vunpack.c.l.b16 %v119
    %v191 = vunpack.c.l.b16 %v120
    %v192 = vunpack.c.l.b16 %v121
    %v193 = vunpack.c.l.b16 %v122
    %v194 = vunpack.c.l.b16 %v123
    %v195 = vunpack.c.l.b16 %v124
    %v196 = vunpack.c.l.b16 %v125
    %v197 = vunpack.c.l.b16 %v126
    %v198 = vunpack.c.l.b16 %v127
    %v199 = vunpack.c.l.b16 %v128
    %v200 = vunpack.c.l.b16 %v129
    %v201 = vunpack.c.l.b16 %v130
    %v202 = vunpack.c.l.b16 %v131
    %v203 = vunpack.c.l.b16 %v132
    %v204 = vunpack.c.l.b16 %v133
    %v205 = vunpack.c.l.b16 %v134
    %v206 = vunpack.c.l.b16 %v135
    %v207 = vunpack.c.l.b16 %v136
    %v208 = vunpack.c.l.b16 %v137
    %v209 = vunpack.c.l.b16 %v138
    %v210 = vunpack.c.l.b16 %v139
    %v211 = vunpack.c.l.b16 %v140
    %v212 = vpack.c.b16 %v181, %v180
    %v213 = vpack.c.b16 %v183, %v182
    %v214 = vpack.c.b16 %v185, %v184
    %v215 = vpack.c.b16 %v187, %v186
    %v216 = vpack.c.b16 %v189, %v188
    %v217 = vpack.c.b16 %v191, %v190
    %v218 = vpack.c.b16 %v193, %v192
    %v219 = vpack.c.b16 %v195, %v194
    %v220 = vpack.c.b16 %v197, %v196
    %v221 = vpack.c.b16 %v199, %v198
    %v222 = vpack.c.b16 %v201, %v200
    %v223 = vpack.c.b16 %v203, %v202
    %v224 = vpack.c.b16 %v205, %v204
    %v225 = vpack.c.b16 %v207, %v206
    %v226 = vpack.c.b16 %v209, %v208
    %v227 = vpack.c.b16 %v211, %v210
    %244 = vmatprep.subr.bf16.mxu0 0
    %245 = vmatpush1.bf16.msra.mxu0 %v219
    %246 = vmatprep.subr.bf16.mxu0 0
    %247 = vmatpush1.bf16.msra.mxu0 %v218
    %248 = vmatprep.subr.bf16.mxu0 0
    %249 = vmatpush1.bf16.msra.mxu0 %v217
    %250 = vmatprep.subr.bf16.mxu0 0
    %251 = vmatpush1.bf16.msra.mxu0 %v216
    %252 = vmatprep.subr.bf16.mxu0 0
    %253 = vmatpush1.bf16.msra.mxu0 %v215
    %254 = vmatprep.subr.bf16.mxu0 0
    %255 = vmatpush1.bf16.msra.mxu0 %v214
    %256 = vmatprep.subr.bf16.mxu0 0
    %257 = vmatpush1.bf16.msra.mxu0 %v213
    %258 = vmatprep.subr.bf16.mxu0 0
    %259 = vmatpush1.bf16.msra.mxu0 %v212
    %260 = vmatprep.subr.bf16.mxu0 0
    %261 = vmatpush2.bf16.msra.mxu0 %v227
    %262 = vmatprep.subr.bf16.mxu0 0
    %263 = vmatpush2.bf16.msra.mxu0 %v226
    %264 = vmatprep.subr.bf16.mxu0 0
    %265 = vmatpush2.bf16.msra.mxu0 %v225
    %266 = vmatprep.subr.bf16.mxu0 0
    %267 = vmatpush2.bf16.msra.mxu0 %v224
    %268 = vmatprep.subr.bf16.mxu0 0
    %269 = vmatpush2.bf16.msra.mxu0 %v223
    %270 = vmatprep.subr.bf16.mxu0 0
    %271 = vmatpush2.bf16.msra.mxu0 %v222
    %272 = vmatprep.subr.bf16.mxu0 0
    %273 = vmatpush2.bf16.msra.mxu0 %v221
    %274 = vmatprep.subr.bf16.mxu0 0
    %275 = vmatpush2.bf16.msra.mxu0 %v220
    %276 = vmatprep.mubr.bf16.mxu0 %v108
    %277 = vmatmul.mubr.bf16.gmra.mxu0 %v107
    %v278 = vpop.f32.mrf.mxu0
    %v279 = vadd.f32 %v146, %v278
    %v280 = vpop.f32.mrf.mxu0
    %v281 = vpop.f32.mrf.mxu0
    %v282 = vpop.f32.mrf.mxu0
    %283 = vdwg.mxu0
    %vm284 = vcmask 64512
    %v285 = vsel %vm284, %v279, -inf
    %286 = vmax.xlane.f32.xlu0 %v285
    %v287 = vpop.xlane.xlu0 %286
    %v288 = vsub.f32 %v279, %v287
    %v289 = vmul.f32 %v288, 1.442695
    %v290 = vpow.pop %v289
    %v291 = vsel %vm284, %v290, 0.0
    %292 = vadd.xlane.f32.xlu0 %v291
    %v293 = vpop.xlane.xlu0 %292
    %v294 = vrcp.pop %v293
    %v295 = vmul.f32 %v290, %v294
    %296 = vst.msk [vmem:[#allocation2] sm:$0xff] %vm284, %v295
    // Predicated region
    $region22: #{classification_head.1} parent=1 // pred_check
      _
    $region23: #{classification_head.1} parent=1 // pred_check_branch
      %298 = sbr.rel (0) target = $region25
    $region24: #{classification_head.1} parent=1 // pred_region
      %s300 = ssub.s32 128, 128
      %301 = vsyncadd [#allocation3], %s300
      %s303 = sshll.u32 [#allocation2], 4
      %s304 = int_to_ptr.vmem [resolvable:$true] %s303
      %306 = dma.vmem_to_hbm [thread:$0]  %s304, 128, %s5, [#allocation3]
    $region25: #{classification_head.1} parent=1 // pred_fallthru
      _
    // Predicated region
    $region26: #{classification_head.1} parent=1 // pred_check
      _
    $region27: #{classification_head.1} parent=1 // pred_check_branch
      %308 = sbr.rel (0) target = $region29
    $region28: #{classification_head.1} parent=1 // pred_region
      %309 = dma.done [#allocation3], 128
    $region29: #{classification_head.1} parent=1 // pred_fallthru
      _
    %310 = vsyncpa [#allocation3], 1

</llo_original>
